<compile_context>
chip_gen: v7x
topology: tpu7x:2x2x1
jax: 0.10.0
libtpu: 0.0.40
codegen_flags: <defaults>
</compile_context>

<pallas_src>
import math

import jax
import jax.numpy as jnp
from jax import lax
from jax.experimental import pallas as pl
from jax.experimental.pallas import tpu as pltpu

LANE = 128       # vreg lane width
SUBLANE = 8      # vreg sublane count (f32)
_HALF_LOG_2PI = 0.5 * math.log(2.0 * math.pi)


def _round_up(n, m):
    return ((n + m - 1) // m) * m


def _pad2d(a, rows, cols):
    return jnp.pad(a, ((0, rows - a.shape[0]), (0, cols - a.shape[1])))


def _softplus(x):
    # Numerically stable softplus; identical formula in kernel and reference.
    return jnp.maximum(x, 0.0) + jnp.log(1.0 + jnp.exp(-jnp.abs(x)))


def _make_encoder_kernel(num_hidden, in_size, latent, w_pack, mm_dtype):
    """Fused MLP -> lane-targeted mean/var heads -> sample + log_prob, packed output."""

    def kernel(*refs):
        x_ref = refs[0]
        layer_refs = refs[1:1 + 2 * num_hidden]
        wl_ref, bl_ref, eps_ref = refs[1 + 2 * num_hidden:4 + 2 * num_hidden]
        out_ref = refs[4 + 2 * num_hidden]

        tb, in_p = x_ref.shape
        L = latent

        # x arrives un-padded (partial block): zero the lanes beyond in_size (they hold
        # whatever was in VMEM), then cast for the MXU.  Exactness: zero x columns times
        # zero weight rows contribute nothing.
        x = x_ref[...]
        if in_size < in_p:
            cin = lax.broadcasted_iota(jnp.int32, (tb, in_p), 1)
            x = jnp.where(cin < in_size, x, 0.0)
        h = x.astype(mm_dtype)

        # Hidden layers: MXU matmul with f32 accumulation, bias + leaky_relu on the VPU.
        for li in range(num_hidden):
            w_ref = layer_refs[2 * li]
            b_ref = layer_refs[2 * li + 1]
            a = jnp.dot(h, w_ref[...], preferred_element_type=jnp.float32) + b_ref[...]
            a = jnp.where(a > 0.0, a, 0.01 * a)            # F.leaky_relu, slope 0.01
            h = a.astype(mm_dtype)

        # Lane-targeted last layer (width 2*w_pack, built by prepare_encoder_params):
        #   A half: lanes [0:L)=mean head (base for z), [L:2L)=var head (for log_prob),
        #           [2L:3L)=mean head (z_means output), [3L:4L)=var head (z_vars output)
        #   B half: lanes [0:L)=var head (std needed by z at the z lanes)
        pre = jnp.dot(h, wl_ref[...], preferred_element_type=jnp.float32) + bl_ref[...]
        a_pre = pre[:, :w_pack]
        b_pre = pre[:, w_pack:]

        col = lax.broadcasted_iota(jnp.int32, (tb, w_pack), 1)
        var_slab = ((col >= L) & (col < 2 * L)) | ((col >= 3 * L) & (col < 4 * L))
        a_vals = jnp.where(var_slab, _softplus(a_pre), a_pre)   # [mean, var, mean, var, ...]
        b_var = _softplus(b_pre)                                 # var at lanes [0:L)

        # eps arrives as [eps, eps] in lanes [0:2L) of a partial block; zero the rest.
        eps = jnp.where(col < 2 * L, eps_ref[...], 0.0)

        z_lane = a_vals + jnp.sqrt(b_var) * eps                  # valid at lanes [0:L)
        logp_lane = (-0.5 * eps * eps - 0.5 * jnp.log(a_vals)    # valid at lanes [L:2L)
                     - _HALF_LOG_2PI)

        out_ref[...] = jnp.where(col < L, z_lane,
                                 jnp.where(col < 2 * L, logp_lane,
                                           jnp.where(col < 4 * L, a_vals, 0.0)))

    return kernel


def prepare_encoder_params(params, latent_size, matmul_dtype=jnp.bfloat16):
    """One-time preprocessing of MLPMultiGaussianEncoder parameters (hoisted out of the
    per-call path).  Hidden weights are zero-padded to 128-multiples and cast to the
    matmul dtype (padding is exact: zero weight rows/cols + zero bias keep padded hidden
    units at exactly 0 through leaky_relu); biases stay f32.  The last fc (mean|var) is
    re-laid-out into a lane-targeted (hidden_p, 2*W_pack) matrix so the kernel's packed
    output needs no cross-lane shuffles.  Returns a flat dict of arrays."""
    num_hidden = sum(1 for k in params if k[0] == "w" and k[1:].isdigit())
    L = latent_size
    assert params["w_last"].shape[1] == 2 * L, "last fc must emit mean|var"
    w_pack = _round_up(4 * L, LANE)

    prepared = {}
    first_in = params["w0"].shape[0] if num_hidden else params["w_last"].shape[0]
    prev_p = _round_up(first_in, LANE)
    for i in range(num_hidden):
        w = params[f"w{i}"]
        b = params[f"b{i}"]
        h_p = _round_up(w.shape[1], LANE)
        prepared[f"w{i}"] = _pad2d(w, prev_p, h_p).astype(matmul_dtype)
        prepared[f"b{i}"] = _pad2d(b, 1, h_p).astype(jnp.float32)
        prev_p = h_p

    wl = params["w_last"].astype(jnp.float32)
    bl = params["b_last"].astype(jnp.float32)
    wm, wv = wl[:, :L], wl[:, L:]
    bm, bv = bl[:, :L], bl[:, L:]
    n_in = wl.shape[0]
    wl_p = jnp.zeros((prev_p, 2 * w_pack), jnp.float32)
    bl_p = jnp.zeros((1, 2 * w_pack), jnp.float32)
    for dst, src_w, src_b in ((0, wm, bm), (L, wv, bv), (2 * L, wm, bm),
                              (3 * L, wv, bv), (w_pack, wv, bv)):
        wl_p = wl_p.at[:n_in, dst:dst + L].set(src_w)
        bl_p = bl_p.at[:, dst:dst + L].set(src_b)
    prepared["w_last"] = wl_p.astype(matmul_dtype)
    prepared["b_last"] = bl_p
    return prepared


def encoder_forward(prepared, *inputs, eps, block_b=1024,
                    clamp_lower_bound=None, clamp_upper_bound=None):
    """MLPMultiGaussianEncoder.forward + sample_z (information-bottleneck path).

    inputs are concatenated along dim 1 (FlattenMLP).  Returns (z_means, z_vars, z,
    prob_z), each (batch, latent) float32.  prob_z is the log-prob of the *unclamped*
    sample (z is clamped afterwards), matching the PyTorch module's order of operations.
    """
    x = inputs[0] if len(inputs) == 1 else jnp.concatenate(inputs, axis=1)
    batch, in_size = x.shape
    L = eps.shape[1]
    assert eps.shape[0] == batch

    num_hidden = sum(1 for k in prepared if k[0] == "w" and k[1:].isdigit())
    first_w = prepared["w0"] if num_hidden else prepared["w_last"]
    mm_dtype = first_w.dtype
    in_p = _round_up(in_size, LANE)
    w_pack = _round_up(4 * L, LANE)
    assert first_w.shape[0] == in_p, "prepared params do not match the input width"
    assert prepared["w_last"].shape[1] == 2 * w_pack, "prepared params do not match latent"

    # Batch tile: as large as block_b, but keep >=2 grid steps whenever batch > 8 so both
    # v7x TensorCores get work under dimension_semantics=("parallel",).
    tb = max(SUBLANE, min(block_b, _round_up(-(-batch // 2), SUBLANE)))
    b_p = _round_up(batch, tb)

    # Per-call data prep: batch padding only (no lane padding, no casts).
    x_p = jnp.pad(x.astype(jnp.float32), ((0, b_p - batch), (0, 0)))
    eps2 = jnp.concatenate([eps, eps], axis=1).astype(jnp.float32)   # [eps|eps] -> z & logp slabs
    eps2 = jnp.pad(eps2, ((0, b_p - batch), (0, 0)))

    operands = [x_p]
    in_specs = [pl.BlockSpec((tb, in_p), lambda i: (i, 0))]          # partial block over in_size
    for li in range(num_hidden):
        w = prepared[f"w{li}"]
        b = prepared[f"b{li}"]
        operands += [w, b]
        in_specs += [pl.BlockSpec(w.shape, lambda i: (0, 0)),        # VMEM-resident weights
                     pl.BlockSpec(b.shape, lambda i: (0, 0))]
    operands += [prepared["w_last"], prepared["b_last"], eps2]
    in_specs += [pl.BlockSpec(prepared["w_last"].shape, lambda i: (0, 0)),
                 pl.BlockSpec(prepared["b_last"].shape, lambda i: (0, 0)),
                 pl.BlockSpec((tb, w_pack), lambda i: (i, 0))]       # partial block over 2L

    packed = pl.pallas_call(
        _make_encoder_kernel(num_hidden, in_size, L, w_pack, mm_dtype),
        grid=(b_p // tb,),
        in_specs=in_specs,
        out_specs=pl.BlockSpec((tb, w_pack), lambda i: (i, 0)),      # single lane-dense output
        out_shape=jax.ShapeDtypeStruct((b_p, w_pack), jnp.float32),
        compiler_params=pltpu.CompilerParams(
            dimension_semantics=("parallel",)),
    )(*operands)

    z = packed[:batch, 0:L]
    prob_z = packed[:batch, L:2 * L]
    z_means = packed[:batch, 2 * L:3 * L]
    z_vars = packed[:batch, 3 * L:4 * L]
    if clamp_lower_bound is not None or clamp_upper_bound is not None:
        z = jnp.clip(z, clamp_lower_bound, clamp_upper_bound)        # sample_clamped path
    return z_means, z_vars, z, prob_z


def init_encoder_params(key, input_size, hidden_sizes, latent_size,
                        init_w=0.003, b_init_value=0.1):
    """Matches the PyTorch init: fanin_init (+/- 1/sqrt(fan_in)) for hidden weights,
    bias = 0.1; uniform(-init_w, init_w) for the last layer.  Weights stored transposed
    vs nn.Linear, i.e. (in_features, out_features); last fc width = 2*latent (mean|var)."""
    keys = jax.random.split(key, len(hidden_sizes) + 2)
    params = {}
    in_size = input_size
    for i, next_size in enumerate(hidden_sizes):
        bound = 1.0 / math.sqrt(in_size)
        params[f"w{i}"] = jax.random.uniform(
            keys[i], (in_size, next_size), minval=-bound, maxval=bound, dtype=jnp.float32)
        params[f"b{i}"] = jnp.full((1, next_size), b_init_value, dtype=jnp.float32)
        in_size = next_size
    params["w_last"] = jax.random.uniform(
        keys[-2], (in_size, 2 * latent_size), minval=-init_w, maxval=init_w,
        dtype=jnp.float32)
    params["b_last"] = jax.random.uniform(
        keys[-1], (1, 2 * latent_size), minval=-init_w, maxval=init_w, dtype=jnp.float32)
    return params


def encoder_reference(params, x, eps, latent_size, matmul_dtype=jnp.bfloat16):
    """Pure-JAX reference of the same forward pass (same dtype choices as the kernel),
    using the original (z - mean) log-prob formulation."""
    num_hidden = sum(1 for k in params if k[0] == "w" and k[1:].isdigit())
    h = x.astype(matmul_dtype)
    for li in range(num_hidden):
        a = jnp.dot(h, params[f"w{li}"].astype(matmul_dtype),
                    preferred_element_type=jnp.float32) + params[f"b{li}"]
        a = jnp.where(a > 0.0, a, 0.01 * a)
        h = a.astype(matmul_dtype)
    pre = jnp.dot(h, params["w_last"].astype(matmul_dtype),
                  preferred_element_type=jnp.float32) + params["b_last"]
    mean = pre[:, :latent_size]
    var = _softplus(pre[:, latent_size:])
    std = jnp.sqrt(var)
    z = mean + std * eps
    diff = z - mean
    logp = -0.5 * diff * diff / var - jnp.log(std) - _HALF_LOG_2PI
    return mean, var, z, logp


if __name__ == "__main__":
    key = jax.random.PRNGKey(0)
    k_obs, k_ctx, k_eps, k_params = jax.random.split(key, 4)

    batch = 10                       # not a multiple of 8 -> exercises batch padding; grid=2
    obs_dim, ctx_dim = 14, 6         # FlattenMLP concat -> input_size = 20
    hidden_sizes = (64, 64)
    latent_size = 8                  # encoder output_size; MLP emits 2*latent (mean|var)

    obs = jax.random.normal(k_obs, (batch, obs_dim), dtype=jnp.float32)
    ctx = jax.random.normal(k_ctx, (batch, ctx_dim), dtype=jnp.float32)
    eps = jax.random.normal(k_eps, (batch, latent_size), dtype=jnp.float32)

    params = init_encoder_params(k_params, obs_dim + ctx_dim, hidden_sizes, latent_size)
    prepared = prepare_encoder_params(params, latent_size)          # one-time prep

    z_means, z_vars, z, prob_z = encoder_forward(prepared, obs, ctx, eps=eps)
    jax.block_until_ready((z_means, z_vars, z, prob_z))

    ref = encoder_reference(params, jnp.concatenate([obs, ctx], axis=1), eps, latent_size)
    names = ("z_means", "z_vars", "z", "prob_z")
    for name, got, want in zip(names, (z_means, z_vars, z, prob_z), ref):
        assert got.shape == (batch, latent_size), (name, got.shape)
        err = float(jnp.max(jnp.abs(got - want)))
        assert jnp.allclose(got, want, atol=2e-3, rtol=2e-3), (name, err)
    assert bool(jnp.all(z_vars > 0.0))

    print("KERNEL_OK")
</pallas_src>

<mosaic_0001>
module attributes {stable_mosaic.version = 11 : i64} {
  func.func @kernel(%arg0: i32, %arg1: memref<8x128xf32, #tpu.memory_space<vmem>>, %arg2: memref<128x128xbf16, #tpu.memory_space<vmem>>, %arg3: memref<1x128xf32, #tpu.memory_space<vmem>>, %arg4: memref<128x128xbf16, #tpu.memory_space<vmem>>, %arg5: memref<1x128xf32, #tpu.memory_space<vmem>>, %arg6: memref<128x256xbf16, #tpu.memory_space<vmem>>, %arg7: memref<1x256xf32, #tpu.memory_space<vmem>>, %arg8: memref<8x128xf32, #tpu.memory_space<vmem>>, %arg9: memref<8x128xf32, #tpu.memory_space<vmem>>) attributes {dimension_semantics = [#tpu.dimension_semantics<parallel>], iteration_bounds = array<i64: 2>, scalar_prefetch = 0 : i64, scratch_operands = 0 : i64, tpu.core_type = #tpu.core_type<tc>, window_params = [{transform_indices = @transform_0, window_bounds = array<i64: 8, 128>}, {pipeline_mode = #tpu.pipeline_mode<synchronous>, transform_indices = @transform_1, window_bounds = array<i64: 128, 128>}, {pipeline_mode = #tpu.pipeline_mode<synchronous>, transform_indices = @transform_2, window_bounds = array<i64: 1, 128>}, {pipeline_mode = #tpu.pipeline_mode<synchronous>, transform_indices = @transform_3, window_bounds = array<i64: 128, 128>}, {pipeline_mode = #tpu.pipeline_mode<synchronous>, transform_indices = @transform_4, window_bounds = array<i64: 1, 128>}, {pipeline_mode = #tpu.pipeline_mode<synchronous>, transform_indices = @transform_5, window_bounds = array<i64: 128, 256>}, {pipeline_mode = #tpu.pipeline_mode<synchronous>, transform_indices = @transform_6, window_bounds = array<i64: 1, 256>}, {transform_indices = @transform_7, window_bounds = array<i64: 8, 128>}, {transform_indices = @transform_8, window_bounds = array<i64: 8, 128>}]} {
    %c0 = arith.constant 0 : index
    %c0_0 = arith.constant 0 : index
    %0 = vector.load %arg1[%c0, %c0_0] : memref<8x128xf32, #tpu.memory_space<vmem>>, vector<8x128xf32>
    %1 = tpu.iota {dimensions = array<i32: 1>} : vector<8x128xi32>
    %c20_i32 = arith.constant 20 : i32
    %2 = vector.broadcast %c20_i32 : i32 to vector<8x128xi32>
    %3 = arith.cmpi slt, %1, %2 : vector<8x128xi32>
    %cst = arith.constant 0.000000e+00 : f32
    %4 = vector.broadcast %cst : f32 to vector<8x128xf32>
    %5 = arith.select %3, %0, %4 : vector<8x128xi1>, vector<8x128xf32>
    %6 = arith.truncf %5 : vector<8x128xf32> to vector<8x128xbf16>
    %c0_1 = arith.constant 0 : index
    %c0_2 = arith.constant 0 : index
    %7 = vector.load %arg2[%c0_1, %c0_2] : memref<128x128xbf16, #tpu.memory_space<vmem>>, vector<128x128xbf16>
    %cst_3 = arith.constant dense<0.000000e+00> : vector<8x128xf32>
    %8 = tpu.matmul %6, %7, %cst_3 {dimension_numbers = #tpu.dot_dimension_numbers<[1], [0], [0], [1], [0, 0, 1, 1], [], []>} : vector<8x128xbf16>, vector<128x128xbf16>, vector<8x128xf32> -> vector<8x128xf32>
    %c0_4 = arith.constant 0 : index
    %c0_5 = arith.constant 0 : index
    %9 = vector.load %arg3[%c0_4, %c0_5] : memref<1x128xf32, #tpu.memory_space<vmem>>, vector<1x128xf32>
    %10 = vector.broadcast %9 : vector<1x128xf32> to vector<8x128xf32>
    %11 = arith.addf %8, %10 : vector<8x128xf32>
    %cst_6 = arith.constant 0.000000e+00 : f32
    %12 = vector.broadcast %cst_6 : f32 to vector<8x128xf32>
    %13 = arith.cmpf ogt, %11, %12 : vector<8x128xf32>
    %cst_7 = arith.constant 0.00999999977 : f32
    %14 = vector.broadcast %cst_7 : f32 to vector<8x128xf32>
    %15 = arith.mulf %14, %11 : vector<8x128xf32>
    %16 = arith.select %13, %11, %15 : vector<8x128xi1>, vector<8x128xf32>
    %17 = arith.truncf %16 : vector<8x128xf32> to vector<8x128xbf16>
    %c0_8 = arith.constant 0 : index
    %c0_9 = arith.constant 0 : index
    %18 = vector.load %arg4[%c0_8, %c0_9] : memref<128x128xbf16, #tpu.memory_space<vmem>>, vector<128x128xbf16>
    %cst_10 = arith.constant dense<0.000000e+00> : vector<8x128xf32>
    %19 = tpu.matmul %17, %18, %cst_10 {dimension_numbers = #tpu.dot_dimension_numbers<[1], [0], [0], [1], [0, 0, 1, 1], [], []>} : vector<8x128xbf16>, vector<128x128xbf16>, vector<8x128xf32> -> vector<8x128xf32>
    %c0_11 = arith.constant 0 : index
    %c0_12 = arith.constant 0 : index
    %20 = vector.load %arg5[%c0_11, %c0_12] : memref<1x128xf32, #tpu.memory_space<vmem>>, vector<1x128xf32>
    %21 = vector.broadcast %20 : vector<1x128xf32> to vector<8x128xf32>
    %22 = arith.addf %19, %21 : vector<8x128xf32>
    %cst_13 = arith.constant 0.000000e+00 : f32
    %23 = vector.broadcast %cst_13 : f32 to vector<8x128xf32>
    %24 = arith.cmpf ogt, %22, %23 : vector<8x128xf32>
    %cst_14 = arith.constant 0.00999999977 : f32
    %25 = vector.broadcast %cst_14 : f32 to vector<8x128xf32>
    %26 = arith.mulf %25, %22 : vector<8x128xf32>
    %27 = arith.select %24, %22, %26 : vector<8x128xi1>, vector<8x128xf32>
    %28 = arith.truncf %27 : vector<8x128xf32> to vector<8x128xbf16>
    %c0_15 = arith.constant 0 : index
    %c0_16 = arith.constant 0 : index
    %29 = vector.load %arg6[%c0_15, %c0_16] : memref<128x256xbf16, #tpu.memory_space<vmem>>, vector<128x256xbf16>
    %cst_17 = arith.constant dense<0.000000e+00> : vector<8x256xf32>
    %30 = tpu.matmul %28, %29, %cst_17 {dimension_numbers = #tpu.dot_dimension_numbers<[1], [0], [0], [1], [0, 0, 1, 1], [], []>} : vector<8x128xbf16>, vector<128x256xbf16>, vector<8x256xf32> -> vector<8x256xf32>
    %c0_18 = arith.constant 0 : index
    %c0_19 = arith.constant 0 : index
    %31 = vector.load %arg7[%c0_18, %c0_19] : memref<1x256xf32, #tpu.memory_space<vmem>>, vector<1x256xf32>
    %32 = vector.broadcast %31 : vector<1x256xf32> to vector<8x256xf32>
    %33 = arith.addf %30, %32 : vector<8x256xf32>
    %34 = vector.extract_strided_slice %33 {offsets = [0, 0], sizes = [8, 128], strides = [1, 1]} : vector<8x256xf32> to vector<8x128xf32>
    %35 = vector.extract_strided_slice %33 {offsets = [0, 128], sizes = [8, 128], strides = [1, 1]} : vector<8x256xf32> to vector<8x128xf32>
    %36 = tpu.iota {dimensions = array<i32: 1>} : vector<8x128xi32>
    %c8_i32 = arith.constant 8 : i32
    %37 = vector.broadcast %c8_i32 : i32 to vector<8x128xi32>
    %38 = arith.cmpi sge, %36, %37 : vector<8x128xi32>
    %c16_i32 = arith.constant 16 : i32
    %39 = vector.broadcast %c16_i32 : i32 to vector<8x128xi32>
    %40 = arith.cmpi slt, %36, %39 : vector<8x128xi32>
    %41 = arith.andi %38, %40 : vector<8x128xi1>
    %c24_i32 = arith.constant 24 : i32
    %42 = vector.broadcast %c24_i32 : i32 to vector<8x128xi32>
    %43 = arith.cmpi sge, %36, %42 : vector<8x128xi32>
    %c32_i32 = arith.constant 32 : i32
    %44 = vector.broadcast %c32_i32 : i32 to vector<8x128xi32>
    %45 = arith.cmpi slt, %36, %44 : vector<8x128xi32>
    %46 = arith.andi %43, %45 : vector<8x128xi1>
    %47 = arith.ori %41, %46 : vector<8x128xi1>
    %cst_20 = arith.constant 0.000000e+00 : f32
    %48 = vector.broadcast %cst_20 : f32 to vector<8x128xf32>
    %49 = arith.maximumf %34, %48 : vector<8x128xf32>
    %50 = math.absf %34 : vector<8x128xf32>
    %cst_21 = arith.constant 0.000000e+00 : f32
    %51 = vector.broadcast %cst_21 : f32 to vector<8x128xf32>
    %52 = arith.subf %51, %50 : vector<8x128xf32>
    %53 = math.exp %52 : vector<8x128xf32>
    %cst_22 = arith.constant 1.000000e+00 : f32
    %54 = vector.broadcast %cst_22 : f32 to vector<8x128xf32>
    %55 = arith.addf %54, %53 : vector<8x128xf32>
    %56 = math.log %55 : vector<8x128xf32>
    %57 = arith.addf %49, %56 : vector<8x128xf32>
    %58 = arith.select %47, %57, %34 : vector<8x128xi1>, vector<8x128xf32>
    %cst_23 = arith.constant 0.000000e+00 : f32
    %59 = vector.broadcast %cst_23 : f32 to vector<8x128xf32>
    %60 = arith.maximumf %35, %59 : vector<8x128xf32>
    %61 = math.absf %35 : vector<8x128xf32>
    %cst_24 = arith.constant 0.000000e+00 : f32
    %62 = vector.broadcast %cst_24 : f32 to vector<8x128xf32>
    %63 = arith.subf %62, %61 : vector<8x128xf32>
    %64 = math.exp %63 : vector<8x128xf32>
    %cst_25 = arith.constant 1.000000e+00 : f32
    %65 = vector.broadcast %cst_25 : f32 to vector<8x128xf32>
    %66 = arith.addf %65, %64 : vector<8x128xf32>
    %67 = math.log %66 : vector<8x128xf32>
    %68 = arith.addf %60, %67 : vector<8x128xf32>
    %c16_i32_26 = arith.constant 16 : i32
    %69 = vector.broadcast %c16_i32_26 : i32 to vector<8x128xi32>
    %70 = arith.cmpi slt, %36, %69 : vector<8x128xi32>
    %c0_27 = arith.constant 0 : index
    %c0_28 = arith.constant 0 : index
    %71 = vector.load %arg8[%c0_27, %c0_28] : memref<8x128xf32, #tpu.memory_space<vmem>>, vector<8x128xf32>
    %cst_29 = arith.constant 0.000000e+00 : f32
    %72 = vector.broadcast %cst_29 : f32 to vector<8x128xf32>
    %73 = arith.select %70, %71, %72 : vector<8x128xi1>, vector<8x128xf32>
    %74 = math.sqrt %68 : vector<8x128xf32>
    %75 = arith.mulf %74, %73 : vector<8x128xf32>
    %76 = arith.addf %58, %75 : vector<8x128xf32>
    %cst_30 = arith.constant -5.000000e-01 : f32
    %77 = vector.broadcast %cst_30 : f32 to vector<8x128xf32>
    %78 = arith.mulf %77, %73 : vector<8x128xf32>
    %79 = arith.mulf %78, %73 : vector<8x128xf32>
    %80 = math.log %58 : vector<8x128xf32>
    %cst_31 = arith.constant 5.000000e-01 : f32
    %81 = vector.broadcast %cst_31 : f32 to vector<8x128xf32>
    %82 = arith.mulf %81, %80 : vector<8x128xf32>
    %83 = arith.subf %79, %82 : vector<8x128xf32>
    %cst_32 = arith.constant 0.918938517 : f32
    %84 = vector.broadcast %cst_32 : f32 to vector<8x128xf32>
    %85 = arith.subf %83, %84 : vector<8x128xf32>
    %c8_i32_33 = arith.constant 8 : i32
    %86 = vector.broadcast %c8_i32_33 : i32 to vector<8x128xi32>
    %87 = arith.cmpi slt, %36, %86 : vector<8x128xi32>
    %c16_i32_34 = arith.constant 16 : i32
    %88 = vector.broadcast %c16_i32_34 : i32 to vector<8x128xi32>
    %89 = arith.cmpi slt, %36, %88 : vector<8x128xi32>
    %c32_i32_35 = arith.constant 32 : i32
    %90 = vector.broadcast %c32_i32_35 : i32 to vector<8x128xi32>
    %91 = arith.cmpi slt, %36, %90 : vector<8x128xi32>
    %cst_36 = arith.constant 0.000000e+00 : f32
    %92 = vector.broadcast %cst_36 : f32 to vector<8x128xf32>
    %93 = arith.select %91, %58, %92 : vector<8x128xi1>, vector<8x128xf32>
    %94 = arith.select %89, %85, %93 : vector<8x128xi1>, vector<8x128xf32>
    %95 = arith.select %87, %76, %94 : vector<8x128xi1>, vector<8x128xf32>
    %c0_37 = arith.constant 0 : index
    %c0_38 = arith.constant 0 : index
    %96 = vector.load %arg9[%c0_37, %c0_38] : memref<8x128xf32, #tpu.memory_space<vmem>>, vector<8x128xf32>
    tpu.vector_store %arg9[%c0_37, %c0_38], %95 {strides = array<i32>} : memref<8x128xf32, #tpu.memory_space<vmem>>, vector<8x128xf32>,
    return
  }
  func.func @transform_0(%arg0: i32) -> (i32, i32) {
    %c0_i32 = arith.constant 0 : i32
    %c0_i32_0 = arith.constant 0 : i32
    return %arg0, %c0_i32 : i32, i32
  }
  func.func @transform_1(%arg0: i32) -> (i32, i32) {
    %c0_i32 = arith.constant 0 : i32
    %c0_i32_0 = arith.constant 0 : i32
    %c0_i32_1 = arith.constant 0 : i32
    return %c0_i32, %c0_i32_0 : i32, i32
  }
  func.func @transform_2(%arg0: i32) -> (i32, i32) {
    %c0_i32 = arith.constant 0 : i32
    %c0_i32_0 = arith.constant 0 : i32
    %c0_i32_1 = arith.constant 0 : i32
    return %c0_i32, %c0_i32_0 : i32, i32
  }
  func.func @transform_3(%arg0: i32) -> (i32, i32) {
    %c0_i32 = arith.constant 0 : i32
    %c0_i32_0 = arith.constant 0 : i32
    %c0_i32_1 = arith.constant 0 : i32
    return %c0_i32, %c0_i32_0 : i32, i32
  }
  func.func @transform_4(%arg0: i32) -> (i32, i32) {
    %c0_i32 = arith.constant 0 : i32
    %c0_i32_0 = arith.constant 0 : i32
    %c0_i32_1 = arith.constant 0 : i32
    return %c0_i32, %c0_i32_0 : i32, i32
  }
  func.func @transform_5(%arg0: i32) -> (i32, i32) {
    %c0_i32 = arith.constant 0 : i32
    %c0_i32_0 = arith.constant 0 : i32
    %c0_i32_1 = arith.constant 0 : i32
    return %c0_i32, %c0_i32_0 : i32, i32
  }
  func.func @transform_6(%arg0: i32) -> (i32, i32) {
    %c0_i32 = arith.constant 0 : i32
    %c0_i32_0 = arith.constant 0 : i32
    %c0_i32_1 = arith.constant 0 : i32
    return %c0_i32, %c0_i32_0 : i32, i32
  }
  func.func @transform_7(%arg0: i32) -> (i32, i32) {
    %c0_i32 = arith.constant 0 : i32
    %c0_i32_0 = arith.constant 0 : i32
    return %arg0, %c0_i32 : i32, i32
  }
  func.func @transform_8(%arg0: i32) -> (i32, i32) {
    %c0_i32 = arith.constant 0 : i32
    %c0_i32_0 = arith.constant 0 : i32
    return %arg0, %c0_i32 : i32, i32
  }
}

</mosaic_0001>

<llo_original>
// kernel: tpu_custom_call.1
$region0: #{tpu_custom_call.1}
  #allocation0 [shape = 'u32[]', space=smem, size = 0x4, offset = 0x4, fixed_abs, tag = 'smem constant byte address 0x4 - core index']
  #allocation1 [shape = 'u32[144,128]{1,0:T(1,128)}', space=vmem, size = 0x12000, scoped, tag = 'internal scratch']
  %s0 = inlined_call_operand.hbm [shape: f32[16,20], index: 0, kind: input, shape index: {}]
  %s1 = inlined_call_operand.hbm [shape: bf16[128,128], index: 1, kind: input, shape index: {}]
  %s2 = inlined_call_operand.vmem [shape: f32[1,128], index: 2, kind: input, shape index: {}]
  %s3 = inlined_call_operand.hbm [shape: bf16[128,128], index: 3, kind: input, shape index: {}]
  %s4 = inlined_call_operand.vmem [shape: f32[1,128], index: 4, kind: input, shape index: {}]
  %s5 = inlined_call_operand.hbm [shape: bf16[128,256], index: 5, kind: input, shape index: {}]
  %s6 = inlined_call_operand.vmem [shape: f32[1,256], index: 6, kind: input, shape index: {}]
  %s7 = inlined_call_operand.vmem [shape: f32[16,16], index: 7, kind: input, shape index: {}]
  %s8 = inlined_call_operand.hbm [shape: f32[16,128], index: 8, kind: output, shape index: {}]
  %s9 = sld [smem:[#allocation0]]
  $region81: #{tpu_custom_call.1} parent=0
    _
  %s11 = ssub.s32 1, %s9
  %s12 = scalar_select 0, %s11, %s9
  $region1: #{tpu_custom_call.1} parent=0
    #allocation2 [shape = 'u8[8192]{0}', space=vmem, size = 0x2000, scoped, tag = 'input window, operand 0']
    #allocation3 [shape = 's32[2]{0}', space=sflag, size = 0x8, scoped, tag = 'scoped memory for tpu_custom_call.1']
    #allocation4 [shape = 's32[2]{0}', space=sflag, size = 0x8, scoped, tag = 'scoped memory for tpu_custom_call.1']
    #allocation5 [shape = 'u8[32768]{0}', space=vmem, size = 0x8000, scoped, tag = 'input window, operand 1, single buffered']
    #allocation6 [shape = 's32[1]{0}', space=sflag, size = 0x4, scoped, tag = 'scoped memory for tpu_custom_call.1']
    #allocation7 [shape = 'u8[32768]{0}', space=vmem, size = 0x8000, scoped, tag = 'input window, operand 3, single buffered']
    #allocation8 [shape = 'u8[65536]{0}', space=vmem, size = 0x10000, scoped, tag = 'input window, operand 5, single buffered']
    #allocation9 [shape = 's32[1]{0}', space=sflag, size = 0x4, scoped, tag = 'scoped memory for tpu_custom_call.1']
    #allocation10 [shape = 'u8[8192]{0}', space=vmem, size = 0x2000, scoped, tag = 'output window, operand 0']
    %13 = vsyncpa [#allocation3], 0
    %s14 = scalar_lea.sflag [#allocation3], 1
    %15 = vsyncpa %s14, 0
    %16 = vsyncpa [#allocation6], 0
    %17 = vsyncpa [#allocation9], 0
    %18 = vsyncpa [#allocation4], 0
    %s19 = scalar_lea.sflag [#allocation4], 1
    %20 = vsyncpa %s19, 0
    loop: start=0, step=1, limit=4
    $region2: #{tpu_custom_call.1} parent=1 // loop_pre_header
      _
    $region3: #{tpu_custom_call.1} parent=1 // loop_header
      %s22 = sphi 0, %s26
      %p23 = scmp.ge.s32.totalorder %s22, 4
      %s32 = sphi 0, %s34
      %s35 = sphi 0, %s32
      %s36 = sphi 0, %s35
      %s52 = sphi 0, %s36
      %s56 = sphi 0, %s56
      %s58 = sphi 0, %s56
      %s59 = sphi 0, %s58
      %s73 = sphi 0, %s59
      %s77 = sphi 0, %s77
      %s79 = sphi 0, %s77
      %s80 = sphi 0, %s79
      %s94 = sphi 0, %s80
      %s98 = sphi 0, %s98
      %s100 = sphi 0, %s98
      %s101 = sphi 0, %s100
      %s115 = sphi 0, %s101
      %s119 = sphi 0, %s119
      %s121 = sphi 0, %s119
      %s122 = sphi 0, %s121
      %s136 = sphi 0, %s122
      %s140 = sphi 0, %s140
      %s142 = sphi 0, %s140
      %s143 = sphi 0, %s142
      %s157 = sphi 0, %s143
      %s161 = sphi 0, %s161
      %s163 = sphi 0, %s161
      %s164 = sphi 0, %s163
      %s178 = sphi 0, %s164
      %s184 = sphi 0, %s186
      %s187 = sphi 0, %s184
      %s188 = sphi 0, %s187
      %s204 = sphi 0, %s188
      %s210 = sphi 0, %s212
      %s213 = sphi 0, %s210
      %s214 = sphi 0, %s213
      %s230 = sphi 0, %s214
    $region4: #{tpu_custom_call.1} parent=1 // loop_header_branch
      %25 = sbr.rel (%p23) target = $region8
    $region5: #{tpu_custom_call.1} parent=1 // loop_body
      %s27 = ssub.s32 %s22, 1
      %s28 = ssub.s32 %s22, 2
      %s29 = sadd.s32 %s22, 1
      %s30 = ssub.s32 %s22, %s29
      %p31 = scmp.eq.s32.totalorder %s30, 0
      %s33 = sadd.s32 %s32, 1
      %s34 = scalar_select %p31, %s32, %s33
      %p37 = pneg %p31
      %p38 = scmp.eq.s32.totalorder %s22, 1
      %p39 = por %p37, %p38
      %p40 = scmp.ne.s32.totalorder %s32, %s35
      %p41 = scmp.eq.s32.totalorder %s22, 0
      %p42 = por %p40, %p41
      %p43 = scmp.ne.s32.totalorder %s32, %s35
      %p44 = scmp.eq.s32.totalorder %s27, 1
      %p45 = por %p43, %p44
      %p46 = scmp.ne.s32.totalorder %s35, %s36
      %p47 = scmp.eq.s32.totalorder %s27, 0
      %p48 = por %p46, %p47
      %p49 = scmp.ne.s32.totalorder %s35, %s36
      %p50 = scmp.eq.s32.totalorder %s28, 1
      %p51 = por %p49, %p50
      %p53 = scmp.ne.s32.totalorder %s36, %s52
      %p54 = scmp.eq.s32.totalorder %s28, 0
      %p55 = por %p53, %p54
      %s57 = sadd.s32 %s56, 1
      %p60 = scmp.eq.s32.totalorder %s22, 1
      %p61 = scmp.ne.s32.totalorder %s56, %s58
      %p62 = scmp.eq.s32.totalorder %s22, 0
      %p63 = por %p61, %p62
      %p64 = scmp.ne.s32.totalorder %s56, %s58
      %p65 = scmp.eq.s32.totalorder %s27, 1
      %p66 = por %p64, %p65
      %p67 = scmp.ne.s32.totalorder %s58, %s59
      %p68 = scmp.eq.s32.totalorder %s27, 0
      %p69 = por %p67, %p68
      %p70 = scmp.ne.s32.totalorder %s58, %s59
      %p71 = scmp.eq.s32.totalorder %s28, 1
      %p72 = por %p70, %p71
      %p74 = scmp.ne.s32.totalorder %s59, %s73
      %p75 = scmp.eq.s32.totalorder %s28, 0
      %p76 = por %p74, %p75
      %s78 = sadd.s32 %s77, 1
      %p81 = scmp.eq.s32.totalorder %s22, 1
      %p82 = scmp.ne.s32.totalorder %s77, %s79
      %p83 = scmp.eq.s32.totalorder %s22, 0
      %p84 = por %p82, %p83
      %p85 = scmp.ne.s32.totalorder %s77, %s79
      %p86 = scmp.eq.s32.totalorder %s27, 1
      %p87 = por %p85, %p86
      %p88 = scmp.ne.s32.totalorder %s79, %s80
      %p89 = scmp.eq.s32.totalorder %s27, 0
      %p90 = por %p88, %p89
      %p91 = scmp.ne.s32.totalorder %s79, %s80
      %p92 = scmp.eq.s32.totalorder %s28, 1
      %p93 = por %p91, %p92
      %p95 = scmp.ne.s32.totalorder %s80, %s94
      %p96 = scmp.eq.s32.totalorder %s28, 0
      %p97 = por %p95, %p96
      %s99 = sadd.s32 %s98, 1
      %p102 = scmp.eq.s32.totalorder %s22, 1
      %p103 = scmp.ne.s32.totalorder %s98, %s100
      %p104 = scmp.eq.s32.totalorder %s22, 0
      %p105 = por %p103, %p104
      %p106 = scmp.ne.s32.totalorder %s98, %s100
      %p107 = scmp.eq.s32.totalorder %s27, 1
      %p108 = por %p106, %p107
      %p109 = scmp.ne.s32.totalorder %s100, %s101
      %p110 = scmp.eq.s32.totalorder %s27, 0
      %p111 = por %p109, %p110
      %p112 = scmp.ne.s32.totalorder %s100, %s101
      %p113 = scmp.eq.s32.totalorder %s28, 1
      %p114 = por %p112, %p113
      %p116 = scmp.ne.s32.totalorder %s101, %s115
      %p117 = scmp.eq.s32.totalorder %s28, 0
      %p118 = por %p116, %p117
      %s120 = sadd.s32 %s119, 1
      %p123 = scmp.eq.s32.totalorder %s22, 1
      %p124 = scmp.ne.s32.totalorder %s119, %s121
      %p125 = scmp.eq.s32.totalorder %s22, 0
      %p126 = por %p124, %p125
      %p127 = scmp.ne.s32.totalorder %s119, %s121
      %p128 = scmp.eq.s32.totalorder %s27, 1
      %p129 = por %p127, %p128
      %p130 = scmp.ne.s32.totalorder %s121, %s122
      %p131 = scmp.eq.s32.totalorder %s27, 0
      %p132 = por %p130, %p131
      %p133 = scmp.ne.s32.totalorder %s121, %s122
      %p134 = scmp.eq.s32.totalorder %s28, 1
      %p135 = por %p133, %p134
      %p137 = scmp.ne.s32.totalorder %s122, %s136
      %p138 = scmp.eq.s32.totalorder %s28, 0
      %p139 = por %p137, %p138
      %s141 = sadd.s32 %s140, 1
      %p144 = scmp.eq.s32.totalorder %s22, 1
      %p145 = scmp.ne.s32.totalorder %s140, %s142
      %p146 = scmp.eq.s32.totalorder %s22, 0
      %p147 = por %p145, %p146
      %p148 = scmp.ne.s32.totalorder %s140, %s142
      %p149 = scmp.eq.s32.totalorder %s27, 1
      %p150 = por %p148, %p149
      %p151 = scmp.ne.s32.totalorder %s142, %s143
      %p152 = scmp.eq.s32.totalorder %s27, 0
      %p153 = por %p151, %p152
      %p154 = scmp.ne.s32.totalorder %s142, %s143
      %p155 = scmp.eq.s32.totalorder %s28, 1
      %p156 = por %p154, %p155
      %p158 = scmp.ne.s32.totalorder %s143, %s157
      %p159 = scmp.eq.s32.totalorder %s28, 0
      %p160 = por %p158, %p159
      %s162 = sadd.s32 %s161, 1
      %p165 = scmp.eq.s32.totalorder %s22, 1
      %p166 = scmp.ne.s32.totalorder %s161, %s163
      %p167 = scmp.eq.s32.totalorder %s22, 0
      %p168 = por %p166, %p167
      %p169 = scmp.ne.s32.totalorder %s161, %s163
      %p170 = scmp.eq.s32.totalorder %s27, 1
      %p171 = por %p169, %p170
      %p172 = scmp.ne.s32.totalorder %s163, %s164
      %p173 = scmp.eq.s32.totalorder %s27, 0
      %p174 = por %p172, %p173
      %p175 = scmp.ne.s32.totalorder %s163, %s164
      %p176 = scmp.eq.s32.totalorder %s28, 1
      %p177 = por %p175, %p176
      %p179 = scmp.ne.s32.totalorder %s164, %s178
      %p180 = scmp.eq.s32.totalorder %s28, 0
      %p181 = por %p179, %p180
      %s182 = ssub.s32 %s22, %s29
      %p183 = scmp.eq.s32.totalorder %s182, 0
      %s185 = sadd.s32 %s184, 1
      %s186 = scalar_select %p183, %s184, %s185
      %p189 = pneg %p183
      %p190 = scmp.eq.s32.totalorder %s22, 1
      %p191 = por %p189, %p190
      %p192 = scmp.ne.s32.totalorder %s184, %s187
      %p193 = scmp.eq.s32.totalorder %s22, 0
      %p194 = por %p192, %p193
      %p195 = scmp.ne.s32.totalorder %s184, %s187
      %p196 = scmp.eq.s32.totalorder %s27, 1
      %p197 = por %p195, %p196
      %p198 = scmp.ne.s32.totalorder %s187, %s188
      %p199 = scmp.eq.s32.totalorder %s27, 0
      %p200 = por %p198, %p199
      %p201 = scmp.ne.s32.totalorder %s187, %s188
      %p202 = scmp.eq.s32.totalorder %s28, 1
      %p203 = por %p201, %p202
      %p205 = scmp.ne.s32.totalorder %s188, %s204
      %p206 = scmp.eq.s32.totalorder %s28, 0
      %p207 = por %p205, %p206
      %s208 = ssub.s32 %s22, %s29
      %p209 = scmp.eq.s32.totalorder %s208, 0
      %s211 = sadd.s32 %s210, 1
      %s212 = scalar_select %p209, %s210, %s211
      %p215 = pneg %p209
      %p216 = scmp.eq.s32.totalorder %s22, 1
      %p217 = por %p215, %p216
      %p218 = scmp.ne.s32.totalorder %s210, %s213
      %p219 = scmp.eq.s32.totalorder %s22, 0
      %p220 = por %p218, %p219
      %p221 = scmp.ne.s32.totalorder %s210, %s213
      %p222 = scmp.eq.s32.totalorder %s27, 1
      %p223 = por %p221, %p222
      %p224 = scmp.ne.s32.totalorder %s213, %s214
      %p225 = scmp.eq.s32.totalorder %s27, 0
      %p226 = por %p224, %p225
      %p227 = scmp.ne.s32.totalorder %s213, %s214
      %p228 = scmp.eq.s32.totalorder %s28, 1
      %p229 = por %p227, %p228
      %p231 = scmp.ne.s32.totalorder %s214, %s230
      %p232 = scmp.eq.s32.totalorder %s28, 0
      %p233 = por %p231, %p232
      %p234 = scmp.le.s32.totalorder 1, %s22
      %p235 = scmp.lt.s32.totalorder %s22, 3
      %p236 = pnand %p234, %p235
      %p237 = pneg %p236
      // Predicated region
      $region9: #{tpu_custom_call.1} parent=5 // pred_check
        _
      $region10: #{tpu_custom_call.1} parent=5 // pred_check_branch
        %239 = sbr.rel (%p236) target = $region12
      $region11: #{tpu_custom_call.1} parent=5 // pred_region
        %s240 = ssub.s32 %s22, 1
        // Predicated region
        $region13: #{tpu_custom_call.1} parent=11 // pred_check
          %p241 = pneg %p69
        $region14: #{tpu_custom_call.1} parent=11 // pred_check_branch
          %243 = sbr.rel (%p241) target = $region16
        $region15: #{tpu_custom_call.1} parent=11 // pred_region
          %s245 = ssub.s32 1024, 1024
          %246 = vsyncadd [#allocation6], %s245
          %s247 = sshll.u32 [#allocation5], 4
          %s248 = int_to_ptr.vmem [resolvable:$true] %s247
          %253 = dma.hbm_to_vmem [thread:$0]  %s1, 1024, %s248, [#allocation6], 64, 64, 4
        $region16: #{tpu_custom_call.1} parent=11 // pred_fallthru
          _
        // Predicated region
        $region17: #{tpu_custom_call.1} parent=11 // pred_check
          %p254 = pneg %p90
        $region18: #{tpu_custom_call.1} parent=11 // pred_check_branch
          %256 = sbr.rel (%p254) target = $region20
        $region19: #{tpu_custom_call.1} parent=11 // pred_region
          _
        $region20: #{tpu_custom_call.1} parent=11 // pred_fallthru
          _
        // Predicated region
        $region21: #{tpu_custom_call.1} parent=11 // pred_check
          %p257 = pneg %p111
        $region22: #{tpu_custom_call.1} parent=11 // pred_check_branch
          %259 = sbr.rel (%p257) target = $region24
        $region23: #{tpu_custom_call.1} parent=11 // pred_region
          %s261 = ssub.s32 1024, 1024
          %262 = vsyncadd [#allocation6], %s261
          %s263 = sshll.u32 [#allocation7], 4
          %s264 = int_to_ptr.vmem [resolvable:$true] %s263
          %269 = dma.hbm_to_vmem [thread:$0]  %s3, 1024, %s264, [#allocation6], 64, 64, 4
        $region24: #{tpu_custom_call.1} parent=11 // pred_fallthru
          _
        // Predicated region
        $region25: #{tpu_custom_call.1} parent=11 // pred_check
          %p270 = pneg %p132
        $region26: #{tpu_custom_call.1} parent=11 // pred_check_branch
          %272 = sbr.rel (%p270) target = $region28
        $region27: #{tpu_custom_call.1} parent=11 // pred_region
          _
        $region28: #{tpu_custom_call.1} parent=11 // pred_fallthru
          _
        // Predicated region
        $region29: #{tpu_custom_call.1} parent=11 // pred_check
          %p273 = pneg %p153
        $region30: #{tpu_custom_call.1} parent=11 // pred_check_branch
          %275 = sbr.rel (%p273) target = $region32
        $region31: #{tpu_custom_call.1} parent=11 // pred_region
          %s277 = ssub.s32 2048, 2048
          %278 = vsyncadd [#allocation9], %s277
          %s279 = sshll.u32 [#allocation8], 4
          %s280 = int_to_ptr.vmem [resolvable:$true] %s279
          %285 = dma.hbm_to_vmem [thread:$0]  %s5, 2048, %s280, [#allocation9], 128, 128, 8
        $region32: #{tpu_custom_call.1} parent=11 // pred_fallthru
          _
        // Predicated region
        $region33: #{tpu_custom_call.1} parent=11 // pred_check
          %p286 = pneg %p174
        $region34: #{tpu_custom_call.1} parent=11 // pred_check_branch
          %288 = sbr.rel (%p286) target = $region36
        $region35: #{tpu_custom_call.1} parent=11 // pred_region
          _
        $region36: #{tpu_custom_call.1} parent=11 // pred_fallthru
          _
      $region12: #{tpu_custom_call.1} parent=5 // pred_fallthru
        _
      %p289 = scmp.lt.s32.totalorder %s22, 2
      // Predicated region
      $region37: #{tpu_custom_call.1} parent=5 // pred_check
        %p290 = pneg %p289
      $region38: #{tpu_custom_call.1} parent=5 // pred_check_branch
        %292 = sbr.rel (%p290) target = $region40
      $region39: #{tpu_custom_call.1} parent=5 // pred_region
        // Predicated region
        $region41: #{tpu_custom_call.1} parent=39 // pred_check
          %p293 = pneg %p42
        $region42: #{tpu_custom_call.1} parent=39 // pred_check_branch
          %295 = sbr.rel (%p293) target = $region44
        $region43: #{tpu_custom_call.1} parent=39 // pred_region
          %s296 = sand.u32 %s32, 1
          %s297 = scalar_lea.sflag [#allocation3], %s296
          %s298 = sand.u32 %s32, 1
          %s299 = smul.addr %s298, 8
          %s300 = scalar_lea.vmem [#allocation2], %s299
          %s302 = ssub.s32 128, 128
          %303 = vsyncadd %s297, %s302
          %s304 = smul.addr %s22, 128
          %s305 = scalar_lea.hbm %s0, %s304
          %s307 = sshll.u32 %s300, 4
          %s308 = int_to_ptr.vmem [resolvable:$true] %s307
          %310 = dma.hbm_to_vmem [thread:$0]  %s305, 128, %s308, %s297
        $region44: #{tpu_custom_call.1} parent=39 // pred_fallthru
          _
        // Predicated region
        $region45: #{tpu_custom_call.1} parent=39 // pred_check
          %p311 = pneg %p194
        $region46: #{tpu_custom_call.1} parent=39 // pred_check_branch
          %313 = sbr.rel (%p311) target = $region48
        $region47: #{tpu_custom_call.1} parent=39 // pred_region
          %p314 = scmp.lt.s32.totalorder %s22, 1
          %s315 = scalar_select %p314, %s22, 1
          %s316 = smul.addr %s315, 8
          %s317 = scalar_lea.vmem %s7, %s316
        $region48: #{tpu_custom_call.1} parent=39 // pred_fallthru
          _
      $region40: #{tpu_custom_call.1} parent=5 // pred_fallthru
        _
      %p318 = scmp.le.s32.totalorder 1, %s22
      %p319 = scmp.lt.s32.totalorder %s22, 3
      %p320 = pnand %p318, %p319
      %p321 = pneg %p320
      // Predicated region
      $region49: #{tpu_custom_call.1} parent=5 // pred_check
        _
      $region50: #{tpu_custom_call.1} parent=5 // pred_check_branch
        %323 = sbr.rel (%p320) target = $region52
      $region51: #{tpu_custom_call.1} parent=5 // pred_region
        %s324 = ssub.s32 %s22, 1
        %s325 = sand.u32 %s35, 1
        %s326 = scalar_lea.sflag [#allocation3], %s325
        %s327 = sand.u32 %s35, 1
        %s328 = smul.addr %s327, 8
        %s329 = scalar_lea.vmem [#allocation2], %s328
        // Predicated region
        $region53: #{tpu_custom_call.1} parent=51 // pred_check
          %p330 = pneg %p48
        $region54: #{tpu_custom_call.1} parent=51 // pred_check_branch
          %332 = sbr.rel (%p330) target = $region56
        $region55: #{tpu_custom_call.1} parent=51 // pred_region
          %333 = dma.done %s326, 128
        $region56: #{tpu_custom_call.1} parent=51 // pred_fallthru
          _
        // Predicated region
        $region57: #{tpu_custom_call.1} parent=51 // pred_check
          %p334 = pneg %p69
        $region58: #{tpu_custom_call.1} parent=51 // pred_check_branch
          %336 = sbr.rel (%p334) target = $region60
        $region59: #{tpu_custom_call.1} parent=51 // pred_region
          %337 = dma.done [#allocation6], 1024
        $region60: #{tpu_custom_call.1} parent=51 // pred_fallthru
          _
        // Predicated region
        $region61: #{tpu_custom_call.1} parent=51 // pred_check
          %p338 = pneg %p111
        $region62: #{tpu_custom_call.1} parent=51 // pred_check_branch
          %340 = sbr.rel (%p338) target = $region64
        $region63: #{tpu_custom_call.1} parent=51 // pred_region
          %341 = dma.done [#allocation6], 1024
        $region64: #{tpu_custom_call.1} parent=51 // pred_fallthru
          _
        // Predicated region
        $region65: #{tpu_custom_call.1} parent=51 // pred_check
          %p342 = pneg %p153
        $region66: #{tpu_custom_call.1} parent=51 // pred_check_branch
          %344 = sbr.rel (%p342) target = $region68
        $region67: #{tpu_custom_call.1} parent=51 // pred_region
          %345 = dma.done [#allocation9], 2048
        $region68: #{tpu_custom_call.1} parent=51 // pred_fallthru
          _
        %s346 = sand.u32 %s35, 1
        %s347 = scalar_lea.sflag [#allocation3], %s346
        %s348 = sand.u32 %s35, 1
        %s349 = smul.addr %s348, 8
        %s350 = scalar_lea.vmem [#allocation2], %s349
        %p351 = pneg %p48
        %p352 = pneg %p45
        %p353 = pneg %p69
        %p354 = pneg %p66
        %p355 = pneg %p90
        %p356 = pneg %p87
        %p357 = pneg %p111
        %p358 = pneg %p108
        %p359 = pneg %p132
        %p360 = pneg %p129
        %p361 = pneg %p153
        %p362 = pneg %p150
        %p363 = pneg %p174
        %p364 = pneg %p171
        %p365 = scmp.lt.s32.totalorder %s27, 1
        %s366 = scalar_select %p365, %s27, 1
        %s367 = smul.addr %s366, 8
        %s368 = scalar_lea.vmem %s7, %s367
        %p369 = pneg %p200
        %p370 = pneg %p197
        %p371 = pneg %p226
        %p372 = pneg %p223
        %s373 = sand.u32 %s213, 1
        %s374 = scalar_lea.sflag [#allocation4], %s373
        %s375 = sand.u32 %s213, 1
        %s376 = smul.addr %s375, 8
        %s377 = scalar_lea.vmem [#allocation10], %s376
        %p378 = scmp.lt.s32.totalorder %s27, 1
        %s379 = scalar_select %p378, %s27, 1
        %s380 = smul.addr %s379, 8
        %s381 = scalar_lea.vmem %s7, %s380
        %v383 = vld [vmem:[%s329] sm:$0xff]
        %v384 = vlaneseq
        %v385 = vand.u32 %v384, 127
        %vm386 = vcmp.lt.s32.totalorder %v385, 20
        %v387 = vsel %vm386, %v383, 0.0
        %v388 = vpack.c.bf16 %v387, %v387
        %v389 = vld [vmem:[#allocation5] sm:$0xf]
        %v390 = vld [vmem:[#allocation5 + $0x4] sm:$0xf]
        %v391 = vld [vmem:[#allocation5 + $0x8] sm:$0xf]
        %v392 = vld [vmem:[#allocation5 + $0xc] sm:$0xf]
        %v393 = vld [vmem:[#allocation5 + $0x10] sm:$0xf]
        %v394 = vld [vmem:[#allocation5 + $0x14] sm:$0xf]
        %v395 = vld [vmem:[#allocation5 + $0x18] sm:$0xf]
        %v396 = vld [vmem:[#allocation5 + $0x1c] sm:$0xf]
        %v397 = vld [vmem:[#allocation5 + $0x20] sm:$0xf]
        %v398 = vld [vmem:[#allocation5 + $0x24] sm:$0xf]
        %v399 = vld [vmem:[#allocation5 + $0x28] sm:$0xf]
        %v400 = vld [vmem:[#allocation5 + $0x2c] sm:$0xf]
        %v401 = vld [vmem:[#allocation5 + $0x30] sm:$0xf]
        %v402 = vld [vmem:[#allocation5 + $0x34] sm:$0xf]
        %v403 = vld [vmem:[#allocation5 + $0x38] sm:$0xf]
        %v404 = vld [vmem:[#allocation5 + $0x3c] sm:$0xf]
        %v405 = vld [vmem:[%s2] sm:$0x1]
        %v407 = vlaneseq
        %v408 = vshrl.u32 %v407, 7
        %v409 = vsub.s32 0, %v408
        %v410 = vrot.slane %v405, %v409
        %v428 = vunpack.c.l.b16 %v389
        %v429 = vunpack.c.l.b16 %v390
        %v430 = vunpack.c.l.b16 %v391
        %v431 = vunpack.c.l.b16 %v392
        %v432 = vunpack.c.l.b16 %v393
        %v433 = vunpack.c.l.b16 %v394
        %v434 = vunpack.c.l.b16 %v395
        %v435 = vunpack.c.l.b16 %v396
        %v436 = vunpack.c.l.b16 %v397
        %v437 = vunpack.c.l.b16 %v398
        %v438 = vunpack.c.l.b16 %v399
        %v439 = vunpack.c.l.b16 %v400
        %v440 = vunpack.c.l.b16 %v401
        %v441 = vunpack.c.l.b16 %v402
        %v442 = vunpack.c.l.b16 %v403
        %v443 = vunpack.c.l.b16 %v404
        %v444 = vpack.c.b16 %v429, %v428
        %v445 = vpack.c.b16 %v431, %v430
        %v446 = vpack.c.b16 %v433, %v432
        %v447 = vpack.c.b16 %v435, %v434
        %v448 = vpack.c.b16 %v437, %v436
        %v449 = vpack.c.b16 %v439, %v438
        %v450 = vpack.c.b16 %v441, %v440
        %v451 = vpack.c.b16 %v443, %v442
        %460 = vmatprep.subr.bf16.mxu0 0
        %461 = vmatpush1.bf16.msra.mxu0 %v444
        %462 = vmatprep.subr.bf16.mxu0 0
        %463 = vmatpush1.bf16.msra.mxu0 %v445
        %464 = vmatprep.subr.bf16.mxu0 0
        %465 = vmatpush1.bf16.msra.mxu0 %v446
        %466 = vmatprep.subr.bf16.mxu0 0
        %467 = vmatpush1.bf16.msra.mxu0 %v447
        %468 = vmatprep.subr.bf16.mxu0 0
        %469 = vmatpush1.bf16.msra.mxu0 %v448
        %470 = vmatprep.subr.bf16.mxu0 0
        %471 = vmatpush1.bf16.msra.mxu0 %v449
        %472 = vmatprep.subr.bf16.mxu0 0
        %473 = vmatpush1.bf16.msra.mxu0 %v450
        %474 = vmatprep.subr.bf16.mxu0 0
        %475 = vmatpush1.bf16.msra.mxu0 %v451
        %476 = vmatprep.subr.bf16.mxu0 0
        %477 = vmatpush1.bf16.msra.mxu0 0
        %478 = vmatprep.subr.bf16.mxu0 0
        %479 = vmatpush1.bf16.msra.mxu0 0
        %480 = vmatprep.subr.bf16.mxu0 0
        %481 = vmatpush1.bf16.msra.mxu0 0
        %482 = vmatprep.subr.bf16.mxu0 0
        %483 = vmatpush1.bf16.msra.mxu0 0
        %484 = vmatprep.subr.bf16.mxu0 0
        %485 = vmatpush1.bf16.msra.mxu0 0
        %486 = vmatprep.subr.bf16.mxu0 0
        %487 = vmatpush1.bf16.msra.mxu0 0
        %488 = vmatprep.subr.bf16.mxu0 0
        %489 = vmatpush1.bf16.msra.mxu0 0
        %490 = vmatprep.subr.bf16.mxu0 0
        %491 = vmatpush1.bf16.msra.mxu0 0
        %492 = vmatprep.mubr.bf16.mxu0 0
        %493 = vmatmul.mubr.bf16.gmra.mrb[0].mxu0 %v388
        %v494 = vpop.f32.mrb[0].mxu0
        %v495 = vadd.f32 %v410, %v494
        %v496 = vpop.f32.mrb[0].mxu0
        %v497 = vpop.f32.mrb[0].mxu0
        %v498 = vpop.f32.mrb[0].mxu0
        %499 = vdwg.mxu0
        %vm500 = vcmp.gt.f32.partialorder %v495, 0.0
        %v501 = vmul.f32 %v495, 0.01
        %v502 = vsel %vm500, %v495, %v501
        %v503 = vpack.c.bf16 %v502, %v502
        %v504 = vld [vmem:[#allocation7] sm:$0xf]
        %v505 = vld [vmem:[#allocation7 + $0x4] sm:$0xf]
        %v506 = vld [vmem:[#allocation7 + $0x8] sm:$0xf]
        %v507 = vld [vmem:[#allocation7 + $0xc] sm:$0xf]
        %v508 = vld [vmem:[#allocation7 + $0x10] sm:$0xf]
        %v509 = vld [vmem:[#allocation7 + $0x14] sm:$0xf]
        %v510 = vld [vmem:[#allocation7 + $0x18] sm:$0xf]
        %v511 = vld [vmem:[#allocation7 + $0x1c] sm:$0xf]
        %v512 = vld [vmem:[#allocation7 + $0x20] sm:$0xf]
        %v513 = vld [vmem:[#allocation7 + $0x24] sm:$0xf]
        %v514 = vld [vmem:[#allocation7 + $0x28] sm:$0xf]
        %v515 = vld [vmem:[#allocation7 + $0x2c] sm:$0xf]
        %v516 = vld [vmem:[#allocation7 + $0x30] sm:$0xf]
        %v517 = vld [vmem:[#allocation7 + $0x34] sm:$0xf]
        %v518 = vld [vmem:[#allocation7 + $0x38] sm:$0xf]
        %v519 = vld [vmem:[#allocation7 + $0x3c] sm:$0xf]
        %v520 = vld [vmem:[%s4] sm:$0x1]
        %v522 = vlaneseq
        %v523 = vshrl.u32 %v522, 7
        %v524 = vsub.s32 0, %v523
        %v525 = vrot.slane %v520, %v524
        %v543 = vunpack.c.l.b16 %v504
        %v544 = vunpack.c.l.b16 %v505
        %v545 = vunpack.c.l.b16 %v506
        %v546 = vunpack.c.l.b16 %v507
        %v547 = vunpack.c.l.b16 %v508
        %v548 = vunpack.c.l.b16 %v509
        %v549 = vunpack.c.l.b16 %v510
        %v550 = vunpack.c.l.b16 %v511
        %v551 = vunpack.c.l.b16 %v512
        %v552 = vunpack.c.l.b16 %v513
        %v553 = vunpack.c.l.b16 %v514
        %v554 = vunpack.c.l.b16 %v515
        %v555 = vunpack.c.l.b16 %v516
        %v556 = vunpack.c.l.b16 %v517
        %v557 = vunpack.c.l.b16 %v518
        %v558 = vunpack.c.l.b16 %v519
        %v559 = vpack.c.b16 %v544, %v543
        %v560 = vpack.c.b16 %v546, %v545
        %v561 = vpack.c.b16 %v548, %v547
        %v562 = vpack.c.b16 %v550, %v549
        %v563 = vpack.c.b16 %v552, %v551
        %v564 = vpack.c.b16 %v554, %v553
        %v565 = vpack.c.b16 %v556, %v555
        %v566 = vpack.c.b16 %v558, %v557
        %575 = vmatprep.subr.bf16.mxu0 0
        %576 = vmatpush1.bf16.msra.mxu0 %v559
        %577 = vmatprep.subr.bf16.mxu0 0
        %578 = vmatpush1.bf16.msra.mxu0 %v560
        %579 = vmatprep.subr.bf16.mxu0 0
        %580 = vmatpush1.bf16.msra.mxu0 %v561
        %581 = vmatprep.subr.bf16.mxu0 0
        %582 = vmatpush1.bf16.msra.mxu0 %v562
        %583 = vmatprep.subr.bf16.mxu0 0
        %584 = vmatpush1.bf16.msra.mxu0 %v563
        %585 = vmatprep.subr.bf16.mxu0 0
        %586 = vmatpush1.bf16.msra.mxu0 %v564
        %587 = vmatprep.subr.bf16.mxu0 0
        %588 = vmatpush1.bf16.msra.mxu0 %v565
        %589 = vmatprep.subr.bf16.mxu0 0
        %590 = vmatpush1.bf16.msra.mxu0 %v566
        %591 = vmatprep.subr.bf16.mxu0 0
        %592 = vmatpush1.bf16.msra.mxu0 0
        %593 = vmatprep.subr.bf16.mxu0 0
        %594 = vmatpush1.bf16.msra.mxu0 0
        %595 = vmatprep.subr.bf16.mxu0 0
        %596 = vmatpush1.bf16.msra.mxu0 0
        %597 = vmatprep.subr.bf16.mxu0 0
        %598 = vmatpush1.bf16.msra.mxu0 0
        %599 = vmatprep.subr.bf16.mxu0 0
        %600 = vmatpush1.bf16.msra.mxu0 0
        %601 = vmatprep.subr.bf16.mxu0 0
        %602 = vmatpush1.bf16.msra.mxu0 0
        %603 = vmatprep.subr.bf16.mxu0 0
        %604 = vmatpush1.bf16.msra.mxu0 0
        %605 = vmatprep.subr.bf16.mxu0 0
        %606 = vmatpush1.bf16.msra.mxu0 0
        %607 = vmatprep.mubr.bf16.mxu0 0
        %608 = vmatmul.mubr.bf16.gmra.mrb[0].mxu0 %v503
        %v609 = vpop.f32.mrb[0].mxu0
        %v610 = vadd.f32 %v525, %v609
        %v611 = vpop.f32.mrb[0].mxu0
        %v612 = vpop.f32.mrb[0].mxu0
        %v613 = vpop.f32.mrb[0].mxu0
        %614 = vdwg.mxu0
        %vm615 = vcmp.gt.f32.partialorder %v610, 0.0
        %v616 = vmul.f32 %v610, 0.01
        %v617 = vsel %vm615, %v610, %v616
        %v618 = vpack.c.bf16 %v617, %v617
        %v619 = vld [vmem:[#allocation8] sm:$0xff]
        %v620 = vld [vmem:[#allocation8 + $0x8] sm:$0xff]
        %v621 = vld [vmem:[#allocation8 + $0x10] sm:$0xff]
        %v622 = vld [vmem:[#allocation8 + $0x18] sm:$0xff]
        %v623 = vld [vmem:[#allocation8 + $0x20] sm:$0xff]
        %v624 = vld [vmem:[#allocation8 + $0x28] sm:$0xff]
        %v625 = vld [vmem:[#allocation8 + $0x30] sm:$0xff]
        %v626 = vld [vmem:[#allocation8 + $0x38] sm:$0xff]
        %v627 = vld [vmem:[#allocation8 + $0x40] sm:$0xff]
        %v628 = vld [vmem:[#allocation8 + $0x48] sm:$0xff]
        %v629 = vld [vmem:[#allocation8 + $0x50] sm:$0xff]
        %v630 = vld [vmem:[#allocation8 + $0x58] sm:$0xff]
        %v631 = vld [vmem:[#allocation8 + $0x60] sm:$0xff]
        %v632 = vld [vmem:[#allocation8 + $0x68] sm:$0xff]
        %v633 = vld [vmem:[#allocation8 + $0x70] sm:$0xff]
        %v634 = vld [vmem:[#allocation8 + $0x78] sm:$0xff]
        %v635 = vld [vmem:[%s6] sm:$0x3]
        %v637 = vlaneseq
        %v638 = vshrl.u32 %v637, 7
        %v639 = vsub.s32 0, %v638
        %v640 = vrot.slane %v635, %v639
        %v641 = vlaneseq
        %v642 = vshrl.u32 %v641, 7
        %v643 = vsub.s32 1, %v642
        %v644 = vrot.slane %v635, %v643
        %v663 = vunpack.c.l.b16 %v619
        %v664 = vunpack.c.h.b16 %v619
        %v665 = vunpack.c.l.b16 %v620
        %v666 = vunpack.c.h.b16 %v620
        %v667 = vunpack.c.l.b16 %v621
        %v668 = vunpack.c.h.b16 %v621
        %v669 = vunpack.c.l.b16 %v622
        %v670 = vunpack.c.h.b16 %v622
        %v671 = vunpack.c.l.b16 %v623
        %v672 = vunpack.c.h.b16 %v623
        %v673 = vunpack.c.l.b16 %v624
        %v674 = vunpack.c.h.b16 %v624
        %v675 = vunpack.c.l.b16 %v625
        %v676 = vunpack.c.h.b16 %v625
        %v677 = vunpack.c.l.b16 %v626
        %v678 = vunpack.c.h.b16 %v626
        %v679 = vunpack.c.l.b16 %v627
        %v680 = vunpack.c.h.b16 %v627
        %v681 = vunpack.c.l.b16 %v628
        %v682 = vunpack.c.h.b16 %v628
        %v683 = vunpack.c.l.b16 %v629
        %v684 = vunpack.c.h.b16 %v629
        %v685 = vunpack.c.l.b16 %v630
        %v686 = vunpack.c.h.b16 %v630
        %v687 = vunpack.c.l.b16 %v631
        %v688 = vunpack.c.h.b16 %v631
        %v689 = vunpack.c.l.b16 %v632
        %v690 = vunpack.c.h.b16 %v632
        %v691 = vunpack.c.l.b16 %v633
        %v692 = vunpack.c.h.b16 %v633
        %v693 = vunpack.c.l.b16 %v634
        %v694 = vunpack.c.h.b16 %v634
        %v695 = vpack.c.b16 %v665, %v663
        %v696 = vpack.c.b16 %v666, %v664
        %v697 = vpack.c.b16 %v669, %v667
        %v698 = vpack.c.b16 %v670, %v668
        %v699 = vpack.c.b16 %v673, %v671
        %v700 = vpack.c.b16 %v674, %v672
        %v701 = vpack.c.b16 %v677, %v675
        %v702 = vpack.c.b16 %v678, %v676
        %v703 = vpack.c.b16 %v681, %v679
        %v704 = vpack.c.b16 %v682, %v680
        %v705 = vpack.c.b16 %v685, %v683
        %v706 = vpack.c.b16 %v686, %v684
        %v707 = vpack.c.b16 %v689, %v687
        %v708 = vpack.c.b16 %v690, %v688
        %v709 = vpack.c.b16 %v693, %v691
        %v710 = vpack.c.b16 %v694, %v692
        %727 = vmatprep.subr.bf16.mxu0 %v696
        %728 = vmatpush1.bf16.msra.mxu0 %v695
        %729 = vmatprep.subr.bf16.mxu0 %v698
        %730 = vmatpush1.bf16.msra.mxu0 %v697
        %731 = vmatprep.subr.bf16.mxu0 %v700
        %732 = vmatpush1.bf16.msra.mxu0 %v699
        %733 = vmatprep.subr.bf16.mxu0 %v702
        %734 = vmatpush1.bf16.msra.mxu0 %v701
        %735 = vmatprep.subr.bf16.mxu0 %v704
        %736 = vmatpush1.bf16.msra.mxu0 %v703
        %737 = vmatprep.subr.bf16.mxu0 %v706
        %738 = vmatpush1.bf16.msra.mxu0 %v705
        %739 = vmatprep.subr.bf16.mxu0 %v708
        %740 = vmatpush1.bf16.msra.mxu0 %v707
        %741 = vmatprep.subr.bf16.mxu0 %v710
        %742 = vmatpush1.bf16.msra.mxu0 %v709
        %743 = vmatprep.subr.bf16.mxu0 0
        %744 = vmatpush1.bf16.msra.mxu0 0
        %745 = vmatprep.subr.bf16.mxu0 0
        %746 = vmatpush1.bf16.msra.mxu0 0
        %747 = vmatprep.subr.bf16.mxu0 0
        %748 = vmatpush1.bf16.msra.mxu0 0
        %749 = vmatprep.subr.bf16.mxu0 0
        %750 = vmatpush1.bf16.msra.mxu0 0
        %751 = vmatprep.subr.bf16.mxu0 0
        %752 = vmatpush1.bf16.msra.mxu0 0
        %753 = vmatprep.subr.bf16.mxu0 0
        %754 = vmatpush1.bf16.msra.mxu0 0
        %755 = vmatprep.subr.bf16.mxu0 0
        %756 = vmatpush1.bf16.msra.mxu0 0
        %757 = vmatprep.subr.bf16.mxu0 0
        %758 = vmatpush1.bf16.msra.mxu0 0
        %759 = vmatprep.mubr.bf16.mxu0 0
        %760 = vmatmul.mubr.bf16.gmra.mrb[0].mxu0 %v618
        %v761 = vpop.f32.mrb[0].mxu0
        %v762 = vadd.f32 %v640, %v761
        %v763 = vpop.f32.mrb[0].mxu0
        %v764 = vadd.f32 %v644, %v763
        %v765 = vpop.f32.mrb[0].mxu0
        %v766 = vpop.f32.mrb[0].mxu0
        %767 = vdwg.mxu0
        %vm768 = vcmp.ge.s32.totalorder %v385, 8
        %vm769 = vcmp.lt.s32.totalorder %v385, 16
        %vm770 = vmand %vm768, %vm769
        %vm771 = vcmp.ge.s32.totalorder %v385, 24
        %vm772 = vcmp.lt.s32.totalorder %v385, 32
        %vm773 = vmand %vm771, %vm772
        %vm774 = vmor %vm770, %vm773
        %v775 = vmax.f32 %v762, 0.0
        %v776 = vand.u32 2147483647, %v762
        %v777 = vsub.f32 0.0, %v776
        %v778 = vmul.f32 %v777, 1.442695
        %v779 = vpow.pop %v778
        %v780 = vadd.f32 %v779, 1.0
        %v781 = vlog2.pop %v780
        %v782 = vmul.f32 %v781, 0.6931472
        %v783 = vadd.f32 %v775, %v782
        %v784 = vsel %vm774, %v783, %v762
        %v785 = vmax.f32 %v764, 0.0
        %v786 = vand.u32 2147483647, %v764
        %v787 = vsub.f32 0.0, %v786
        %v788 = vmul.f32 %v787, 1.442695
        %v789 = vpow.pop %v788
        %v790 = vadd.f32 %v789, 1.0
        %v791 = vlog2.pop %v790
        %v792 = vmul.f32 %v791, 0.6931472
        %v793 = vadd.f32 %v785, %v792
        %v794 = vld [vmem:[%s381] sm:$0xff]
        %v795 = vsel %vm769, %v794, 0.0
        %v796 = vrsqrt.pop %v793
        %v797 = vmul.f32 %v793, %v796
        %vm798 = vcmp.eq.f32.partialorder %v793, inf
        %v799 = vsel %vm798, %v793, %v797
        %vm800 = vcmp.eq.f32.partialorder %v793, 0.0
        %v801 = vand.u32 %v793, 2147483648
        %v802 = vsel %vm800, %v801, %v799
        %v803 = vmul.f32 %v802, %v795
        %v804 = vadd.f32 %v784, %v803
        %v805 = vmul.f32 %v795, -0.5
        %v806 = vmul.f32 %v805, %v795
        %v807 = vlog2.pop %v784
        %v808 = vmul.f32 %v807, 0.6931472
        %v809 = vmul.f32 %v808, 0.5
        %v810 = vsub.f32 %v806, %v809
        %v811 = vsub.f32 %v810, 0.9189385
        %vm812 = vcmp.lt.s32.totalorder %v385, 8
        %v813 = vsel %vm772, %v784, 0.0
        %v814 = vsel %vm769, %v811, %v813
        %v815 = vsel %vm812, %v804, %v814
        %816 = vst [vmem:[%s377] sm:$0xff] %v815
        %s817 = sand.u32 %s213, 1
        %s818 = scalar_lea.sflag [#allocation4], %s817
        %s819 = sand.u32 %s213, 1
        %s820 = smul.addr %s819, 8
        %s821 = scalar_lea.vmem [#allocation10], %s820
        // Predicated region
        $region69: #{tpu_custom_call.1} parent=51 // pred_check
          %p822 = pneg %p223
        $region70: #{tpu_custom_call.1} parent=51 // pred_check_branch
          %824 = sbr.rel (%p822) target = $region72
        $region71: #{tpu_custom_call.1} parent=51 // pred_region
          %s826 = ssub.s32 128, 128
          %827 = vsyncadd %s818, %s826
          %s828 = smul.addr %s27, 128
          %s829 = scalar_lea.hbm %s8, %s828
          %s831 = sshll.u32 %s821, 4
          %s832 = int_to_ptr.vmem [resolvable:$true] %s831
          %834 = dma.vmem_to_hbm [thread:$0]  %s832, 128, %s829, %s818
        $region72: #{tpu_custom_call.1} parent=51 // pred_fallthru
          _
      $region52: #{tpu_custom_call.1} parent=5 // pred_fallthru
        _
      %p835 = scmp.le.s32.totalorder 2, %s22
      // Predicated region
      $region73: #{tpu_custom_call.1} parent=5 // pred_check
        %p836 = pneg %p835
      $region74: #{tpu_custom_call.1} parent=5 // pred_check_branch
        %838 = sbr.rel (%p836) target = $region76
      $region75: #{tpu_custom_call.1} parent=5 // pred_region
        %s839 = ssub.s32 %s22, 2
        // Predicated region
        $region77: #{tpu_custom_call.1} parent=75 // pred_check
          %p840 = pneg %p229
        $region78: #{tpu_custom_call.1} parent=75 // pred_check_branch
          %842 = sbr.rel (%p840) target = $region80
        $region79: #{tpu_custom_call.1} parent=75 // pred_region
          %s843 = sand.u32 %s214, 1
          %s844 = scalar_lea.sflag [#allocation4], %s843
          %s845 = sand.u32 %s214, 1
          %s846 = smul.addr %s845, 8
          %s847 = scalar_lea.vmem [#allocation10], %s846
          %848 = dma.done %s844, 128
        $region80: #{tpu_custom_call.1} parent=75 // pred_fallthru
          _
      $region76: #{tpu_custom_call.1} parent=5 // pred_fallthru
        _
    $region6: #{tpu_custom_call.1} parent=1 // loop_footer
      %s26 = sadd.s32 1, %s22
    $region7: #{tpu_custom_call.1} parent=1 // loop_footer_branch
      %21 = sbr.rel target = $region3
    $region8: #{tpu_custom_call.1} parent=1 // loop_exit
      _
    %849 = vsyncpa [#allocation3], 1
    %s850 = scalar_lea.sflag [#allocation3], 1
    %851 = vsyncpa %s850, 1
    %852 = vsyncpa [#allocation6], 1
    %853 = vsyncpa [#allocation9], 1
    %854 = vsyncpa [#allocation4], 1
    %s855 = scalar_lea.sflag [#allocation4], 1
    %856 = vsyncpa %s855, 1

</llo_original>
